<compile_context>
chip_gen: v6e
topology: v6e:2x2x1
jax: 0.10.0
libtpu: 0.0.40
codegen_flags: <defaults>
</compile_context>

<pallas_src>
import functools

import jax
import jax.numpy as jnp
from jax.experimental import pallas as pl
from jax.experimental.pallas import tpu as pltpu

ALPHA = 1.0
EPS = 1e-24


def _conf_loss_kernel(logits_ref, conf_ref, target_ref, out_ref,
                      nll_acc, conf_acc, cnt_acc,
                      *, n_rows: int, ragged: bool, alpha: float, eps: float):
    pid = pl.program_id(0)

    @pl.when(pid == 0)
    def _init():
        nll_acc[...] = jnp.zeros_like(nll_acc)
        conf_acc[...] = jnp.zeros_like(conf_acc)
        cnt_acc[...] = jnp.zeros_like(cnt_acc)

    logits = logits_ref[...].astype(jnp.float32)      # (TN, C)
    conf = conf_ref[...].astype(jnp.float32)          # (TN, 1)
    target = target_ref[...]                          # (TN, 1) int32

    tn, c = logits.shape

    known = target >= 0                                # (TN, 1) bool
    if ragged:
        # Rows beyond the true batch (ragged final block) may hold stale VMEM
        # garbage (even NaN bit patterns).  We never mask the big logits tile;
        # instead the per-row (TN, 1) contributions are gated with selects, so
        # garbage lanes are simply discarded.
        row_ids = jax.lax.broadcasted_iota(jnp.int32, (tn, 1), 0) + pid * tn
        valid = row_ids < n_rows                       # (TN, 1) bool
        known = jnp.logical_and(known, valid)

    # Fused softmax-at-target: only exp and one select+reduce touch the
    # (TN, C) tile; the full normalized softmax is never materialized.
    class_ids = jax.lax.broadcasted_iota(jnp.int32, (tn, c), 1)
    is_tgt = class_ids == target                        # (TN, C) bool
    m = jnp.max(logits, axis=1, keepdims=True)           # (TN, 1)
    e = jnp.exp(logits - m)                               # (TN, C)
    denom = jnp.sum(e, axis=1, keepdims=True)             # (TN, 1)
    e_t = jnp.sum(jnp.where(is_tgt, e, 0.0), axis=1, keepdims=True)
    p_t = e_t * pl.reciprocal(denom, approx=False)        # exact: keeps 1e-5 tol

    # Adjusted prediction at the target class.  Clamping only this entry is
    # equivalent to clamping the whole adjusted matrix because the one-hot
    # mask in the reference NLL selects only this entry.
    adjusted_t = jnp.clip(conf * p_t + (1.0 - conf), eps, 1.0)
    nll_rows = jnp.where(known, -jnp.log(adjusted_t), 0.0)   # (TN, 1)

    # Confidence regularizer over ALL real rows.
    neg_log_conf = -jnp.log(jnp.clip(conf, eps, 1.0))        # (TN, 1)
    if ragged:
        neg_log_conf = jnp.where(valid, neg_log_conf, 0.0)

    nll_acc[...] += jnp.sum(nll_rows, axis=0, keepdims=True)
    conf_acc[...] += jnp.sum(neg_log_conf, axis=0, keepdims=True)
    cnt_acc[...] += jnp.sum(known.astype(jnp.float32), axis=0, keepdims=True)

    @pl.when(pid == pl.num_programs(0) - 1)
    def _finalize():
        loss_nll = nll_acc[...]                              # (1, 1)
        loss_conf = conf_acc[...] * jnp.float32(1.0 / n_rows)
        total = jnp.where(cnt_acc[...] > 0.0,
                          loss_nll + jnp.float32(alpha) * loss_conf,
                          jnp.float32(0.0))
        out_ref[...] = total


def confidence_loss(logits: jax.Array, confidence: jax.Array,
                    target: jax.Array, *, alpha: float = ALPHA,
                    eps: float = EPS, block_rows: int | None = None) -> jax.Array:
    """logits: (N, C) any float dtype, confidence: (N,) or (N, 1), target: (N,) int."""
    n, c = logits.shape
    conf2d = confidence.reshape(n, 1)                    # native dtype, no f32 copy
    tgt2d = target.reshape(n, 1).astype(jnp.int32)

    if block_rows is None:
        # Memory-bound: largest row tile whose logits block stays <= ~2 MiB.
        # Double-buffered inputs plus the in-kernel f32 temporaries of the same
        # footprint stay well under the 32 MiB scoped-VMEM request on every
        # generation (v5e/v6e 128 MiB physical, v7x 64 MiB physical).
        itemsize = jnp.dtype(logits.dtype).itemsize
        budget = 2 * 1024 * 1024
        block_rows = max(8, min(4096, budget // max(1, c * itemsize)))
    block_rows = min(block_rows, max(8, ((n + 7) // 8) * 8))
    block_rows = max(8, (block_rows // 8) * 8)

    grid = (pl.cdiv(n, block_rows),)
    ragged = (n % block_rows) != 0

    kernel = functools.partial(_conf_loss_kernel, n_rows=n, ragged=ragged,
                               alpha=float(alpha), eps=float(eps))

    out = pl.pallas_call(
        kernel,
        out_shape=jax.ShapeDtypeStruct((1, 1), jnp.float32),
        grid_spec=pltpu.PrefetchScalarGridSpec(
            num_scalar_prefetch=0,
            grid=grid,
            in_specs=[
                pl.BlockSpec((block_rows, c), lambda i: (i, 0)),
                pl.BlockSpec((block_rows, 1), lambda i: (i, 0)),
                pl.BlockSpec((block_rows, 1), lambda i: (i, 0)),
            ],
            out_specs=pl.BlockSpec((1, 1), lambda i: (0, 0)),
            scratch_shapes=[
                pltpu.VMEM((1, 1), jnp.float32),   # running sum of NLL (known rows)
                pltpu.VMEM((1, 1), jnp.float32),   # running sum of -log(conf)
                pltpu.VMEM((1, 1), jnp.float32),   # running count of known rows
            ],
        ),
        compiler_params=pltpu.CompilerParams(
            dimension_semantics=("arbitrary",),
            vmem_limit_bytes=32 * 1024 * 1024,
        ),
    )(logits, conf2d, tgt2d)
    return out[0, 0]


def _reference(logits, confidence, target, alpha=ALPHA, eps=EPS):
    # pure-JAX reference mirroring the PyTorch forward
    known = target >= 0
    c = logits.shape[1]
    onehot = jax.nn.one_hot(jnp.where(known, target, 0), c, dtype=jnp.float32)
    p = jax.nn.softmax(logits.astype(jnp.float32), axis=1)
    conf = confidence.reshape(-1, 1).astype(jnp.float32)
    adj = p * conf + (1.0 - conf) * onehot
    adj = jnp.clip(adj, eps, 1.0)
    nll_rows = -jnp.sum(jnp.log(adj) * onehot, axis=1)
    loss_nll = jnp.sum(jnp.where(known, nll_rows, 0.0))
    loss_conf = jnp.mean(-jnp.log(jnp.clip(conf, eps, 1.0)))
    return jnp.where(jnp.any(known), loss_nll + alpha * loss_conf, 0.0)


if __name__ == "__main__":
    key = jax.random.PRNGKey(0)
    k1, k2, k3, k4, k5, k6 = jax.random.split(key, 6)

    # --- small case (single grid step, non-ragged path) ---
    N, C = 8, 16
    logits = jax.random.normal(k1, (N, C), dtype=jnp.float32)
    confidence = jax.nn.sigmoid(jax.random.normal(k2, (N, 1), dtype=jnp.float32))
    target = jax.random.randint(k3, (N,), 0, C, dtype=jnp.int32)
    target = target.at[1].set(-1).at[5].set(-1)      # mark two samples as OOD

    loss = confidence_loss(logits, confidence, target)
    jax.block_until_ready(loss)
    ref = _reference(logits, confidence, target)
    assert jnp.allclose(loss, ref, rtol=1e-5, atol=1e-5), (loss, ref)

    # --- multi-block + ragged final block (exercises grid accumulation) ---
    N2, C2 = 20, 16
    logits2 = jax.random.normal(k4, (N2, C2), dtype=jnp.float32)
    confidence2 = jax.nn.sigmoid(jax.random.normal(k5, (N2, 1), dtype=jnp.float32))
    target2 = jax.random.randint(k6, (N2,), 0, C2, dtype=jnp.int32)
    target2 = target2.at[0].set(-1).at[7].set(-1).at[13].set(-1)

    loss2 = confidence_loss(logits2, confidence2, target2, block_rows=8)
    jax.block_until_ready(loss2)
    ref2 = _reference(logits2, confidence2, target2)
    assert jnp.allclose(loss2, ref2, rtol=1e-5, atol=1e-5), (loss2, ref2)

    print("KERNEL_OK")
</pallas_src>

<mosaic_0001>
module attributes {stable_mosaic.version = 11 : i64} {
  func.func @_conf_loss_kernel(%arg0: i32, %arg1: memref<8x16xf32, #tpu.memory_space<vmem>>, %arg2: memref<8x1xf32, #tpu.memory_space<vmem>>, %arg3: memref<8x1xi32, #tpu.memory_space<vmem>>, %arg4: memref<1x1xf32, #tpu.memory_space<vmem>>, %arg5: memref<1x1xf32, #tpu.memory_space<vmem>>, %arg6: memref<1x1xf32, #tpu.memory_space<vmem>>, %arg7: memref<1x1xf32, #tpu.memory_space<vmem>>) attributes {dimension_semantics = [#tpu.dimension_semantics<arbitrary>], iteration_bounds = array<i64: 1>, scalar_prefetch = 0 : i64, scratch_operands = 3 : i64, tpu.core_type = #tpu.core_type<tc>, window_params = [{transform_indices = @transform_0, window_bounds = array<i64: 8, 16>}, {transform_indices = @transform_1, window_bounds = array<i64: 8, 1>}, {transform_indices = @transform_2, window_bounds = array<i64: 8, 1>}, {pipeline_mode = #tpu.pipeline_mode<synchronous>, transform_indices = @transform_3, window_bounds = array<i64: 1, 1>}]} {
    %c0_i32 = arith.constant 0 : i32
    %0 = arith.cmpi eq, %arg0, %c0_i32 : i32
    %1 = arith.extui %0 : i1 to i32
    %c0_i32_0 = arith.constant 0 : i32
    %2 = arith.cmpi ne, %1, %c0_i32_0 : i32
    scf.if %2 {
      %cst_35 = arith.constant 0.000000e+00 : f32
      %64 = vector.broadcast %cst_35 : f32 to vector<1x1xf32>
      %c0_36 = arith.constant 0 : index
      %c0_37 = arith.constant 0 : index
      %65 = vector.load %arg5[%c0_36, %c0_37] : memref<1x1xf32, #tpu.memory_space<vmem>>, vector<1x1xf32>
      tpu.vector_store %arg5[%c0_36, %c0_37], %64 {strides = array<i32>} : memref<1x1xf32, #tpu.memory_space<vmem>>, vector<1x1xf32>,
      %cst_38 = arith.constant 0.000000e+00 : f32
      %66 = vector.broadcast %cst_38 : f32 to vector<1x1xf32>
      %c0_39 = arith.constant 0 : index
      %c0_40 = arith.constant 0 : index
      %67 = vector.load %arg6[%c0_39, %c0_40] : memref<1x1xf32, #tpu.memory_space<vmem>>, vector<1x1xf32>
      tpu.vector_store %arg6[%c0_39, %c0_40], %66 {strides = array<i32>} : memref<1x1xf32, #tpu.memory_space<vmem>>, vector<1x1xf32>,
      %cst_41 = arith.constant 0.000000e+00 : f32
      %68 = vector.broadcast %cst_41 : f32 to vector<1x1xf32>
      %c0_42 = arith.constant 0 : index
      %c0_43 = arith.constant 0 : index
      %69 = vector.load %arg7[%c0_42, %c0_43] : memref<1x1xf32, #tpu.memory_space<vmem>>, vector<1x1xf32>
      tpu.vector_store %arg7[%c0_42, %c0_43], %68 {strides = array<i32>} : memref<1x1xf32, #tpu.memory_space<vmem>>, vector<1x1xf32>,
    } else {
    }
    %c0 = arith.constant 0 : index
    %c0_1 = arith.constant 0 : index
    %3 = vector.load %arg1[%c0, %c0_1] : memref<8x16xf32, #tpu.memory_space<vmem>>, vector<8x16xf32>
    %c0_2 = arith.constant 0 : index
    %c0_3 = arith.constant 0 : index
    %4 = vector.load %arg2[%c0_2, %c0_3] : memref<8x1xf32, #tpu.memory_space<vmem>>, vector<8x1xf32>
    %c0_4 = arith.constant 0 : index
    %c0_5 = arith.constant 0 : index
    %5 = vector.load %arg3[%c0_4, %c0_5] : memref<8x1xi32, #tpu.memory_space<vmem>>, vector<8x1xi32>
    %c0_i32_6 = arith.constant 0 : i32
    %6 = vector.broadcast %c0_i32_6 : i32 to vector<8x1xi32>
    %7 = arith.cmpi sge, %5, %6 : vector<8x1xi32>
    %8 = tpu.iota {dimensions = array<i32: 1>} : vector<8x16xi32>
    %9 = vector.broadcast %5 : vector<8x1xi32> to vector<8x16xi32>
    %10 = arith.cmpi eq, %8, %9 : vector<8x16xi32>
    %cst = arith.constant dense<0xFF800000> : vector<8xf32>
    %11 = vector.multi_reduction <maximumf>, %3, %cst [1] : vector<8x16xf32> to vector<8xf32>
    %12 = vector.shape_cast %11 : vector<8xf32> to vector<8x1xf32>
    %13 = vector.broadcast %12 : vector<8x1xf32> to vector<8x16xf32>
    %14 = arith.subf %3, %13 : vector<8x16xf32>
    %15 = math.exp %14 : vector<8x16xf32>
    %cst_7 = arith.constant dense<0.000000e+00> : vector<8xf32>
    %16 = vector.multi_reduction <add>, %15, %cst_7 [1] : vector<8x16xf32> to vector<8xf32>
    %17 = vector.shape_cast %16 : vector<8xf32> to vector<8x1xf32>
    %cst_8 = arith.constant 0.000000e+00 : f32
    %18 = vector.broadcast %cst_8 : f32 to vector<8x16xf32>
    %19 = arith.select %10, %15, %18 : vector<8x16xi1>, vector<8x16xf32>
    %cst_9 = arith.constant dense<0.000000e+00> : vector<8xf32>
    %20 = vector.multi_reduction <add>, %19, %cst_9 [1] : vector<8x16xf32> to vector<8xf32>
    %21 = vector.shape_cast %20 : vector<8xf32> to vector<8x1xf32>
    %22 = tpu.reciprocal %17 : vector<8x1xf32> -> vector<8x1xf32>
    %23 = arith.mulf %21, %22 : vector<8x1xf32>
    %24 = arith.mulf %4, %23 : vector<8x1xf32>
    %cst_10 = arith.constant 1.000000e+00 : f32
    %25 = vector.broadcast %cst_10 : f32 to vector<8x1xf32>
    %26 = arith.subf %25, %4 : vector<8x1xf32>
    %27 = arith.addf %24, %26 : vector<8x1xf32>
    %cst_11 = arith.constant 1.000000e-24 : f32
    %cst_12 = arith.constant 1.000000e+00 : f32
    %28 = vector.broadcast %cst_11 : f32 to vector<8x1xf32>
    %29 = arith.maximumf %28, %27 : vector<8x1xf32>
    %30 = vector.broadcast %cst_12 : f32 to vector<8x1xf32>
    %31 = arith.minimumf %30, %29 : vector<8x1xf32>
    %32 = math.log %31 : vector<8x1xf32>
    %cst_13 = arith.constant 0.000000e+00 : f32
    %33 = vector.broadcast %cst_13 : f32 to vector<8x1xf32>
    %34 = arith.subf %33, %32 : vector<8x1xf32>
    %cst_14 = arith.constant 0.000000e+00 : f32
    %35 = vector.broadcast %cst_14 : f32 to vector<8x1xf32>
    %36 = arith.select %7, %34, %35 : vector<8x1xi1>, vector<8x1xf32>
    %cst_15 = arith.constant 1.000000e-24 : f32
    %cst_16 = arith.constant 1.000000e+00 : f32
    %37 = vector.broadcast %cst_15 : f32 to vector<8x1xf32>
    %38 = arith.maximumf %37, %4 : vector<8x1xf32>
    %39 = vector.broadcast %cst_16 : f32 to vector<8x1xf32>
    %40 = arith.minimumf %39, %38 : vector<8x1xf32>
    %41 = math.log %40 : vector<8x1xf32>
    %cst_17 = arith.constant 0.000000e+00 : f32
    %42 = vector.broadcast %cst_17 : f32 to vector<8x1xf32>
    %43 = arith.subf %42, %41 : vector<8x1xf32>
    %c0_18 = arith.constant 0 : index
    %c0_19 = arith.constant 0 : index
    %44 = vector.load %arg5[%c0_18, %c0_19] : memref<1x1xf32, #tpu.memory_space<vmem>>, vector<1x1xf32>
    %cst_20 = arith.constant dense<0.000000e+00> : vector<1xf32>
    %45 = vector.multi_reduction <add>, %36, %cst_20 [0] : vector<8x1xf32> to vector<1xf32>
    %46 = vector.shape_cast %45 : vector<1xf32> to vector<1x1xf32>
    %47 = arith.addf %44, %46 : vector<1x1xf32>
    %c0_21 = arith.constant 0 : index
    %c0_22 = arith.constant 0 : index
    %48 = vector.load %arg5[%c0_21, %c0_22] : memref<1x1xf32, #tpu.memory_space<vmem>>, vector<1x1xf32>
    tpu.vector_store %arg5[%c0_21, %c0_22], %47 {strides = array<i32>} : memref<1x1xf32, #tpu.memory_space<vmem>>, vector<1x1xf32>,
    %c0_23 = arith.constant 0 : index
    %c0_24 = arith.constant 0 : index
    %49 = vector.load %arg6[%c0_23, %c0_24] : memref<1x1xf32, #tpu.memory_space<vmem>>, vector<1x1xf32>
    %cst_25 = arith.constant dense<0.000000e+00> : vector<1xf32>
    %50 = vector.multi_reduction <add>, %43, %cst_25 [0] : vector<8x1xf32> to vector<1xf32>
    %51 = vector.shape_cast %50 : vector<1xf32> to vector<1x1xf32>
    %52 = arith.addf %49, %51 : vector<1x1xf32>
    %c0_26 = arith.constant 0 : index
    %c0_27 = arith.constant 0 : index
    %53 = vector.load %arg6[%c0_26, %c0_27] : memref<1x1xf32, #tpu.memory_space<vmem>>, vector<1x1xf32>
    tpu.vector_store %arg6[%c0_26, %c0_27], %52 {strides = array<i32>} : memref<1x1xf32, #tpu.memory_space<vmem>>, vector<1x1xf32>,
    %c0_28 = arith.constant 0 : index
    %c0_29 = arith.constant 0 : index
    %54 = vector.load %arg7[%c0_28, %c0_29] : memref<1x1xf32, #tpu.memory_space<vmem>>, vector<1x1xf32>
    %55 = arith.extui %7 : vector<8x1xi1> to vector<8x1xi32>
    %56 = arith.sitofp %55 : vector<8x1xi32> to vector<8x1xf32>
    %cst_30 = arith.constant dense<0.000000e+00> : vector<1xf32>
    %57 = vector.multi_reduction <add>, %56, %cst_30 [0] : vector<8x1xf32> to vector<1xf32>
    %58 = vector.shape_cast %57 : vector<1xf32> to vector<1x1xf32>
    %59 = arith.addf %54, %58 : vector<1x1xf32>
    %c0_31 = arith.constant 0 : index
    %c0_32 = arith.constant 0 : index
    %60 = vector.load %arg7[%c0_31, %c0_32] : memref<1x1xf32, #tpu.memory_space<vmem>>, vector<1x1xf32>
    tpu.vector_store %arg7[%c0_31, %c0_32], %59 {strides = array<i32>} : memref<1x1xf32, #tpu.memory_space<vmem>>, vector<1x1xf32>,
    %c0_i32_33 = arith.constant 0 : i32
    %61 = arith.cmpi eq, %arg0, %c0_i32_33 : i32
    %62 = arith.extui %61 : i1 to i32
    %c0_i32_34 = arith.constant 0 : i32
    %63 = arith.cmpi ne, %62, %c0_i32_34 : i32
    scf.if %63 {
      %c0_35 = arith.constant 0 : index
      %c0_36 = arith.constant 0 : index
      %64 = vector.load %arg5[%c0_35, %c0_36] : memref<1x1xf32, #tpu.memory_space<vmem>>, vector<1x1xf32>
      %c0_37 = arith.constant 0 : index
      %c0_38 = arith.constant 0 : index
      %65 = vector.load %arg6[%c0_37, %c0_38] : memref<1x1xf32, #tpu.memory_space<vmem>>, vector<1x1xf32>
      %cst_39 = arith.constant 1.250000e-01 : f32
      %66 = vector.broadcast %cst_39 : f32 to vector<1x1xf32>
      %67 = arith.mulf %65, %66 : vector<1x1xf32>
      %c0_40 = arith.constant 0 : index
      %c0_41 = arith.constant 0 : index
      %68 = vector.load %arg7[%c0_40, %c0_41] : memref<1x1xf32, #tpu.memory_space<vmem>>, vector<1x1xf32>
      %cst_42 = arith.constant 0.000000e+00 : f32
      %69 = vector.broadcast %cst_42 : f32 to vector<1x1xf32>
      %70 = arith.cmpf ogt, %68, %69 : vector<1x1xf32>
      %cst_43 = arith.constant 1.000000e+00 : f32
      %71 = vector.broadcast %cst_43 : f32 to vector<1x1xf32>
      %72 = arith.mulf %71, %67 : vector<1x1xf32>
      %73 = arith.addf %64, %72 : vector<1x1xf32>
      %cst_44 = arith.constant 0.000000e+00 : f32
      %74 = vector.broadcast %cst_44 : f32 to vector<1x1xf32>
      %75 = arith.select %70, %73, %74 : vector<1x1xi1>, vector<1x1xf32>
      %c0_45 = arith.constant 0 : index
      %c0_46 = arith.constant 0 : index
      %76 = vector.load %arg4[%c0_45, %c0_46] : memref<1x1xf32, #tpu.memory_space<vmem>>, vector<1x1xf32>
      tpu.vector_store %arg4[%c0_45, %c0_46], %75 {strides = array<i32>} : memref<1x1xf32, #tpu.memory_space<vmem>>, vector<1x1xf32>,
    } else {
    }
    return
  }
  func.func @transform_0(%arg0: i32) -> (i32, i32) {
    %c0_i32 = arith.constant 0 : i32
    %c0_i32_0 = arith.constant 0 : i32
    return %arg0, %c0_i32 : i32, i32
  }
  func.func @transform_1(%arg0: i32) -> (i32, i32) {
    %c0_i32 = arith.constant 0 : i32
    %c0_i32_0 = arith.constant 0 : i32
    return %arg0, %c0_i32 : i32, i32
  }
  func.func @transform_2(%arg0: i32) -> (i32, i32) {
    %c0_i32 = arith.constant 0 : i32
    %c0_i32_0 = arith.constant 0 : i32
    return %arg0, %c0_i32 : i32, i32
  }
  func.func @transform_3(%arg0: i32) -> (i32, i32) {
    %c0_i32 = arith.constant 0 : i32
    %c0_i32_0 = arith.constant 0 : i32
    %c0_i32_1 = arith.constant 0 : i32
    return %c0_i32, %c0_i32_0 : i32, i32
  }
}

</mosaic_0001>

<llo_original>
// kernel: tpu_custom_call.1
$region0: #{tpu_custom_call.1}
  #allocation0 [shape = 'u32[]', space=smem, size = 0x4, offset = 0x4, fixed_abs, tag = 'smem constant byte address 0x4 - core index']
  #allocation1 [shape = 'u32[144,128]{1,0:T(1,128)}', space=vmem, size = 0x12000, scoped, tag = 'internal scratch']
  #allocation2 [shape = 'f32[1,1]{1,0:T(1,128)}', space=vmem, size = 0x200, scoped, tag = 'scratch operand']
  #allocation3 [shape = 'f32[1,1]{1,0:T(1,128)}', space=vmem, size = 0x200, scoped, tag = 'scratch operand']
  #allocation4 [shape = 'f32[1,1]{1,0:T(1,128)}', space=vmem, size = 0x200, scoped, tag = 'scratch operand']
  %s0 = inlined_call_operand.vmem [shape: f32[8,16], index: 0, kind: input, shape index: {}]
  %s1 = inlined_call_operand.vmem [shape: f32[8,1], index: 1, kind: input, shape index: {}]
  %s2 = inlined_call_operand.vmem [shape: s32[8,1], index: 2, kind: input, shape index: {}]
  %s3 = inlined_call_operand.hbm [shape: f32[1,1], index: 3, kind: output, shape index: {}]
  %s4 = sld [smem:[#allocation0]]
  $region30: #{tpu_custom_call.1} parent=0
    _
  %s6 = ssub.s32 1, %s4
  %s7 = scalar_select 0, %s6, %s4
  $region1: #{tpu_custom_call.1} parent=0
    #allocation5 [shape = 'u8[512]{0}', space=vmem, size = 0x400, scoped, tag = 'output window, operand 0, single buffered']
    #allocation6 [shape = 's32[1]{0}', space=sflag, size = 0x4, scoped, tag = 'scoped memory for tpu_custom_call.1']
    %8 = vsyncpa [#allocation6], 0
    // Predicated region
    $region2: #{tpu_custom_call.1} parent=1 // pred_check
      _
    $region3: #{tpu_custom_call.1} parent=1 // pred_check_branch
      %10 = sbr.rel (0) target = $region5
    $region4: #{tpu_custom_call.1} parent=1 // pred_region
      _
    $region5: #{tpu_custom_call.1} parent=1 // pred_fallthru
      _
    // Predicated region
    $region6: #{tpu_custom_call.1} parent=1 // pred_check
      _
    $region7: #{tpu_custom_call.1} parent=1 // pred_check_branch
      %12 = sbr.rel (0) target = $region9
    $region8: #{tpu_custom_call.1} parent=1 // pred_region
      _
    $region9: #{tpu_custom_call.1} parent=1 // pred_fallthru
      _
    // Predicated region
    $region10: #{tpu_custom_call.1} parent=1 // pred_check
      _
    $region11: #{tpu_custom_call.1} parent=1 // pred_check_branch
      %14 = sbr.rel (0) target = $region13
    $region12: #{tpu_custom_call.1} parent=1 // pred_region
      _
    $region13: #{tpu_custom_call.1} parent=1 // pred_fallthru
      _
    %p15 = scmp.eq.s32.totalorder 0, 0
    // Predicated region
    $region14: #{tpu_custom_call.1} parent=1 // pred_check
      %p16 = pneg %p15
    $region15: #{tpu_custom_call.1} parent=1 // pred_check_branch
      %18 = sbr.rel (%p16) target = $region17
    $region16: #{tpu_custom_call.1} parent=1 // pred_region
      %vm19 = vcmask 0
      %20 = vst.msk [vmem:[#allocation2] sm:$0x1] %vm19, 0.0
      %21 = vst.msk [vmem:[#allocation3] sm:$0x1] %vm19, 0.0
      %22 = vst.msk [vmem:[#allocation4] sm:$0x1] %vm19, 0.0
    $region17: #{tpu_custom_call.1} parent=1 // pred_fallthru
      _
    %v23 = vld [vmem:[%s0] sm:$0xff]
    %v24 = vld [vmem:[%s1] sm:$0xff]
    %v25 = vld [vmem:[%s2] sm:$0xff]
    %vm26 = vcmp.ge.s32.totalorder %v25, 0
    %v27 = vlaneseq
    %v28 = vand.u32 %v27, 127
    %29 = vset.pattern.permute.xlu0 0
    %30 = vperm.xlu0 %29, %v25
    %v31 = vpop.permute.xlu0 %30
    %vm32 = vcmp.eq.s32.totalorder %v28, %v31
    %vm33 = vcmask 130048
    %v34 = vsel %vm33, %v23, -inf
    %35 = vmax.xlane.f32.xlu0 %v34
    %v36 = vpop.xlane.xlu0 %35
    %v37 = vsub.f32 %v23, %v36
    %v38 = vmul.f32 %v37, 1.442695
    %v39 = vpow.pop %v38
    %v40 = vsel %vm33, %v39, 0.0
    %41 = vadd.xlane.f32.xlu0 %v40
    %v42 = vpop.xlane.xlu0 %41
    %v43 = vsel %vm32, %v39, 0.0
    %v44 = vsel %vm33, %v43, 0.0
    %45 = vadd.xlane.f32.xlu0 %v44
    %v46 = vpop.xlane.xlu0 %45
    %v47 = vrcp.pop %v42
    %v48 = vmul.f32 %v46, %v47
    %v49 = vmul.f32 %v24, %v48
    %v50 = vsub.f32 1.0, %v24
    %v51 = vadd.f32 %v49, %v50
    %v52 = vmax.f32 %v51, 1e-24
    %v53 = vmin.f32 %v52, 1.0
    %v54 = vlog2.pop %v53
    %v55 = vmul.f32 %v54, 0.6931472
    %v56 = vsub.f32 0.0, %v55
    %v57 = vsel %vm26, %v56, 0.0
    %v58 = vmax.f32 %v24, 1e-24
    %v59 = vmin.f32 %v58, 1.0
    %v60 = vlog2.pop %v59
    %v61 = vmul.f32 %v60, 0.6931472
    %v62 = vsub.f32 0.0, %v61
    %v63 = vld [vmem:[#allocation2] sm:$0x1]
    %vm64 = vcmask 7168
    %v65 = vsel %vm64, %v57, 0.0
    %v66 = vrot.slane %v65, 4
    %v67 = vadd.f32 %v65, %v66
    %v68 = vrot.slane %v67, 2
    %v69 = vadd.f32 %v67, %v68
    %v70 = vrot.slane %v69, 1
    %v71 = vadd.f32 %v69, %v70
    %v72 = vadd.f32 %v63, %v71
    %vm73 = vcmask 0
    %74 = vst.msk [vmem:[#allocation2] sm:$0x1] %vm73, %v72
    %v75 = vld [vmem:[#allocation3] sm:$0x1]
    %v76 = vsel %vm64, %v62, 0.0
    %v77 = vrot.slane %v76, 4
    %v78 = vadd.f32 %v76, %v77
    %v79 = vrot.slane %v78, 2
    %v80 = vadd.f32 %v78, %v79
    %v81 = vrot.slane %v80, 1
    %v82 = vadd.f32 %v80, %v81
    %v83 = vadd.f32 %v75, %v82
    %84 = vst.msk [vmem:[#allocation3] sm:$0x1] %vm73, %v83
    %v85 = vld [vmem:[#allocation4] sm:$0x1]
    %v86 = vsel %vm26, 1, 0
    %v87 = vcvt.s32.f32 %v86
    %v88 = vsel %vm64, %v87, 0.0
    %v89 = vrot.slane %v88, 4
    %v90 = vadd.f32 %v88, %v89
    %v91 = vrot.slane %v90, 2
    %v92 = vadd.f32 %v90, %v91
    %v93 = vrot.slane %v92, 1
    %v94 = vadd.f32 %v92, %v93
    %v95 = vadd.f32 %v85, %v94
    %96 = vst.msk [vmem:[#allocation4] sm:$0x1] %vm73, %v95
    // Predicated region
    $region18: #{tpu_custom_call.1} parent=1 // pred_check
      %p97 = pneg %p15
    $region19: #{tpu_custom_call.1} parent=1 // pred_check_branch
      %99 = sbr.rel (%p97) target = $region21
    $region20: #{tpu_custom_call.1} parent=1 // pred_region
      %v100 = vld [vmem:[#allocation2] sm:$0x1]
      %v101 = vld [vmem:[#allocation3] sm:$0x1]
      %v102 = vmul.f32 %v101, 0.125
      %v103 = vld [vmem:[#allocation4] sm:$0x1]
      %vm104 = vcmp.gt.f32.partialorder %v103, 0.0
      %v105 = vadd.f32 %v100, %v102
      %v106 = vsel %vm104, %v105, 0.0
      %107 = vst.msk [vmem:[#allocation5] sm:$0x1] %vm73, %v106
    $region21: #{tpu_custom_call.1} parent=1 // pred_fallthru
      _
    // Predicated region
    $region22: #{tpu_custom_call.1} parent=1 // pred_check
      _
    $region23: #{tpu_custom_call.1} parent=1 // pred_check_branch
      %109 = sbr.rel (0) target = $region25
    $region24: #{tpu_custom_call.1} parent=1 // pred_region
      %s111 = ssub.s32 16, 16
      %112 = vsyncadd [#allocation6], %s111
      %s114 = sshll.u32 [#allocation5], 4
      %s115 = int_to_ptr.vmem [resolvable:$true] %s114
      %117 = dma.vmem_to_hbm [thread:$0]  %s115, 16, %s3, [#allocation6]
    $region25: #{tpu_custom_call.1} parent=1 // pred_fallthru
      _
    // Predicated region
    $region26: #{tpu_custom_call.1} parent=1 // pred_check
      _
    $region27: #{tpu_custom_call.1} parent=1 // pred_check_branch
      %119 = sbr.rel (0) target = $region29
    $region28: #{tpu_custom_call.1} parent=1 // pred_region
      %120 = dma.done [#allocation6], 16
    $region29: #{tpu_custom_call.1} parent=1 // pred_fallthru
      _
    %121 = vsyncpa [#allocation6], 1

</llo_original>
